<compile_context>
chip_gen: v5e
topology: v5e:2x2
jax: 0.10.0
libtpu: 0.0.40
codegen_flags: <defaults>
</compile_context>

<pallas_src>
import jax
import jax.numpy as jnp
import numpy as np
from jax.experimental import pallas as pl
from jax.experimental.pallas import tpu as pltpu


def _cdiv(a, b):
    return -(-a // b)


def _round_up(a, m):
    return _cdiv(a, m) * m


def _transform_params_kernel(s_ref, d_ref, o_ref):
    # s_ref: (TB, 2N) source landmarks, interleaved [x0, y0, x1, y1, ...]
    # d_ref: (TB, 2N) destination landmarks, same interleaving
    # o_ref: (TB, 6)  rows [a, b, -b, a, tx, ty]
    s = s_ref[...]
    d = d_ref[...]

    two_n = s.shape[1]
    n = two_n // 2
    inv_n = jnp.float32(1.0 / n)

    lane = jax.lax.broadcasted_iota(jnp.int32, s.shape, 1)
    is_x = (lane % 2) == 0                      # even lanes = x coords, odd = y coords

    # Per-row means of x / y coordinates (masked lane reductions).
    sx_m = jnp.sum(jnp.where(is_x, s, 0.0), axis=1, keepdims=True) * inv_n   # (TB, 1)
    sy_m = jnp.sum(jnp.where(is_x, 0.0, s), axis=1, keepdims=True) * inv_n
    dx_m = jnp.sum(jnp.where(is_x, d, 0.0), axis=1, keepdims=True) * inv_n
    dy_m = jnp.sum(jnp.where(is_x, 0.0, d), axis=1, keepdims=True) * inv_n

    # Center (two-pass, like the reference — numerically robust).
    s_c = s - jnp.where(is_x, sx_m, sy_m)       # (TB, 2N)
    d_c = d - jnp.where(is_x, dx_m, dy_m)

    norm = jnp.sum(s_c * s_c, axis=1, keepdims=True)       # (TB, 1)
    a_num = jnp.sum(s_c * d_c, axis=1, keepdims=True)      # sum(sxc*dxc + syc*dyc)

    # Pair-swap + sign via an exact permutation matrix P (entries in {-1, 0, +1}):
    #   P[2i, 2i+1] = +1, P[2i+1, 2i] = -1
    #   => (s_c @ P) . d_c summed over lanes == sum_i (sxc_i*dyc_i - syc_i*dxc_i)
    rj = jax.lax.broadcasted_iota(jnp.int32, (two_n, two_n), 0)
    ck = jax.lax.broadcasted_iota(jnp.int32, (two_n, two_n), 1)
    j_even = (rj % 2) == 0
    p = (jnp.where(jnp.logical_and(j_even, ck == rj + 1), 1.0, 0.0)
         - jnp.where(jnp.logical_and(jnp.logical_not(j_even), ck == rj - 1), 1.0, 0.0))
    s_rot = jnp.dot(s_c, p.astype(jnp.float32),
                    preferred_element_type=jnp.float32,
                    precision=jax.lax.Precision.HIGHEST)
    b_num = jnp.sum(s_rot * d_c, axis=1, keepdims=True)    # (TB, 1)

    inv_norm = 1.0 / norm                                   # exact: tiny (TB, 1) vector
    a = a_num * inv_norm
    b = b_num * inv_norm

    # translation = dest_mean - src_mean @ [[a, b], [-b, a]]
    tx = dx_m - (sx_m * a - sy_m * b)
    ty = dy_m - (sx_m * b + sy_m * a)

    o_ref[:, 0:1] = a
    o_ref[:, 1:2] = b
    o_ref[:, 2:3] = -b
    o_ref[:, 3:4] = a
    o_ref[:, 4:5] = tx
    o_ref[:, 5:6] = ty


def _plan_rows(B, N):
    """Pick rows-per-grid-step (sublane tile) and grid length."""
    if B <= 128:
        # Single step; block equals the full batch dim (legal for any B).
        return B, 1
    # VMEM budget: double-buffered inputs + live (TB, 2N) temporaries ~ 56*N bytes/row.
    # Stay well under v5e's 16 MiB default scoped VMEM (v6e/v7x have >= 32 MiB).
    vmem_rows = max(8, (((10 << 20) // (56 * max(N, 1))) // 8) * 8)
    # >= 2 grid steps so the "parallel" axis feeds both v7x TensorCores.
    half = _round_up(_cdiv(B, 2), 8)
    tb = max(8, min(1024, vmem_rows, half))
    return tb, _cdiv(B, tb)


def transform_params_layer(x, mean_shape):
    """Pallas equivalent of TransformParamsLayer.forward.

    x:          (B, 2N) float — interleaved (x, y) source landmarks.
    mean_shape: (B, N, 2) float — destination landmarks.
    returns:    (B, 6) float32 — [a, b, -b, a, tx, ty].
    """
    B = x.shape[0]
    N = mean_shape.shape[1]
    two_n = 2 * N

    src = x.astype(jnp.float32)                              # (B, 2N) native layout
    dst = mean_shape.astype(jnp.float32).reshape(B, two_n)   # free contiguous reshape

    tb, steps = _plan_rows(B, N)
    grid = (steps,)

    in_spec = pl.BlockSpec((tb, two_n), lambda i: (i, 0))
    out_spec = pl.BlockSpec((tb, 6), lambda i: (i, 0))

    return pl.pallas_call(
        _transform_params_kernel,
        out_shape=jax.ShapeDtypeStruct((B, 6), jnp.float32),
        grid_spec=pltpu.PrefetchScalarGridSpec(
            num_scalar_prefetch=0,
            grid=grid,
            in_specs=[in_spec, in_spec],
            out_specs=out_spec,
        ),
        compiler_params=pltpu.CompilerParams(
            dimension_semantics=("parallel",),
        ),
    )(src, dst)


def _reference_jax(x, mean_shape):
    """Pure-JAX reference mirroring the PyTorch forward exactly."""
    B = x.shape[0]
    dest = mean_shape
    source = x.reshape(B, -1, 2)
    dest_mean = jnp.mean(dest, axis=1, keepdims=True)
    src_mean = jnp.mean(source, axis=1, keepdims=True)
    dest_vec = (dest - dest_mean).reshape(B, -1, 1)
    src_vec = (source - src_mean).reshape(B, 1, -1)
    norm = jnp.linalg.norm(src_vec, ord=2, axis=-1) ** 2           # (B, 1)
    a = jnp.squeeze(jnp.matmul(src_vec, dest_vec)) / jnp.squeeze(norm)
    sxc = src_vec[:, 0, 0::2]
    syc = src_vec[:, 0, 1::2]
    dxc = dest_vec[:, 0::2, 0]
    dyc = dest_vec[:, 1::2, 0]
    b = jnp.sum(sxc * dyc - syc * dxc, axis=1) / jnp.squeeze(norm)
    A = jnp.stack(
        [jnp.stack([a, b], axis=-1), jnp.stack([-b, a], axis=-1)], axis=1
    )                                                              # (B, 2, 2)
    src_mean_t = jnp.matmul(src_mean, A)                           # (B, 1, 2)
    return jnp.concatenate(
        [A.reshape(B, 4), dest_mean[:, 0, :] - src_mean_t[:, 0, :]], axis=1
    )


if __name__ == "__main__":
    key = jax.random.PRNGKey(0)
    k1, k2, k3, k4 = jax.random.split(key, 4)

    # Small shapes implied by the module: B=2 samples, N=64 landmarks.
    B, N = 2, 64
    x = jax.random.normal(k1, (B, 2 * N), dtype=jnp.float32)
    mean_shape = jax.random.normal(k2, (B, N, 2), dtype=jnp.float32)

    fn = jax.jit(transform_params_layer)
    out = jax.block_until_ready(fn(x, mean_shape))
    ref = _reference_jax(x, mean_shape)
    np.testing.assert_allclose(np.asarray(out), np.asarray(ref), rtol=1e-4, atol=1e-4)

    # Second case: exercises the multi-step "parallel" grid and a partial last block.
    B2, N2 = 300, 64
    x2 = jax.random.normal(k3, (B2, 2 * N2), dtype=jnp.float32)
    ms2 = jax.random.normal(k4, (B2, N2, 2), dtype=jnp.float32)
    out2 = jax.block_until_ready(jax.jit(transform_params_layer)(x2, ms2))
    ref2 = _reference_jax(x2, ms2)
    np.testing.assert_allclose(np.asarray(out2), np.asarray(ref2), rtol=1e-4, atol=1e-4)

    print("KERNEL_OK")
</pallas_src>

<mosaic_0001>
module attributes {stable_mosaic.version = 11 : i64} {
  func.func @_transform_params_kernel(%arg0: i32, %arg1: memref<2x128xf32, #tpu.memory_space<vmem>>, %arg2: memref<2x128xf32, #tpu.memory_space<vmem>>, %arg3: memref<2x6xf32, #tpu.memory_space<vmem>>) attributes {dimension_semantics = [#tpu.dimension_semantics<parallel>], iteration_bounds = array<i64: 1>, scalar_prefetch = 0 : i64, scratch_operands = 0 : i64, tpu.core_type = #tpu.core_type<tc>, window_params = [{transform_indices = @transform_0, window_bounds = array<i64: 2, 128>}, {transform_indices = @transform_1, window_bounds = array<i64: 2, 128>}, {transform_indices = @transform_2, window_bounds = array<i64: 2, 6>}]} {
    %c0 = arith.constant 0 : index
    %c0_0 = arith.constant 0 : index
    %0 = vector.load %arg1[%c0, %c0_0] : memref<2x128xf32, #tpu.memory_space<vmem>>, vector<2x128xf32>
    %c0_1 = arith.constant 0 : index
    %c0_2 = arith.constant 0 : index
    %1 = vector.load %arg2[%c0_1, %c0_2] : memref<2x128xf32, #tpu.memory_space<vmem>>, vector<2x128xf32>
    %2 = tpu.iota {dimensions = array<i32: 1>} : vector<2x128xi32>
    %c2_i32 = arith.constant 2 : i32
    %c0_i32 = arith.constant 0 : i32
    %3 = arith.cmpi eq, %c2_i32, %c0_i32 : i32
    %c1_i32 = arith.constant 1 : i32
    %4 = arith.select %3, %c1_i32, %c2_i32 : i32
    %5 = vector.broadcast %4 : i32 to vector<2x128xi32>
    %6 = arith.remsi %2, %5 : vector<2x128xi32>
    %c0_i32_3 = arith.constant 0 : i32
    %7 = vector.broadcast %c0_i32_3 : i32 to vector<2x128xi32>
    %8 = arith.cmpi ne, %6, %7 : vector<2x128xi32>
    %c0_i32_4 = arith.constant 0 : i32
    %9 = vector.broadcast %c0_i32_4 : i32 to vector<2x128xi32>
    %10 = arith.cmpi slt, %6, %9 : vector<2x128xi32>
    %c0_i32_5 = arith.constant 0 : i32
    %11 = arith.cmpi slt, %4, %c0_i32_5 : i32
    %12 = vector.broadcast %11 : i1 to vector<2x128xi1>
    %13 = vector.broadcast %12 : vector<2x128xi1> to vector<2x128xi1>
    %14 = arith.xori %10, %13 : vector<2x128xi1>
    %15 = arith.andi %14, %8 : vector<2x128xi1>
    %16 = vector.broadcast %4 : i32 to vector<2x128xi32>
    %17 = arith.addi %6, %16 : vector<2x128xi32>
    %18 = arith.select %15, %17, %6 : vector<2x128xi1>, vector<2x128xi32>
    %c0_i32_6 = arith.constant 0 : i32
    %19 = vector.broadcast %c0_i32_6 : i32 to vector<2x128xi32>
    %20 = arith.cmpi eq, %18, %19 : vector<2x128xi32>
    %cst = arith.constant 0.000000e+00 : f32
    %21 = vector.broadcast %cst : f32 to vector<2x128xf32>
    %22 = arith.select %20, %0, %21 : vector<2x128xi1>, vector<2x128xf32>
    %cst_7 = arith.constant dense<0.000000e+00> : vector<2xf32>
    %23 = vector.multi_reduction <add>, %22, %cst_7 [1] : vector<2x128xf32> to vector<2xf32>
    %24 = vector.shape_cast %23 : vector<2xf32> to vector<2x1xf32>
    %cst_8 = arith.constant 1.562500e-02 : f32
    %25 = vector.broadcast %cst_8 : f32 to vector<2x1xf32>
    %26 = arith.mulf %24, %25 : vector<2x1xf32>
    %cst_9 = arith.constant 0.000000e+00 : f32
    %27 = vector.broadcast %cst_9 : f32 to vector<2x128xf32>
    %28 = arith.select %20, %27, %0 : vector<2x128xi1>, vector<2x128xf32>
    %cst_10 = arith.constant dense<0.000000e+00> : vector<2xf32>
    %29 = vector.multi_reduction <add>, %28, %cst_10 [1] : vector<2x128xf32> to vector<2xf32>
    %30 = vector.shape_cast %29 : vector<2xf32> to vector<2x1xf32>
    %cst_11 = arith.constant 1.562500e-02 : f32
    %31 = vector.broadcast %cst_11 : f32 to vector<2x1xf32>
    %32 = arith.mulf %30, %31 : vector<2x1xf32>
    %cst_12 = arith.constant 0.000000e+00 : f32
    %33 = vector.broadcast %cst_12 : f32 to vector<2x128xf32>
    %34 = arith.select %20, %1, %33 : vector<2x128xi1>, vector<2x128xf32>
    %cst_13 = arith.constant dense<0.000000e+00> : vector<2xf32>
    %35 = vector.multi_reduction <add>, %34, %cst_13 [1] : vector<2x128xf32> to vector<2xf32>
    %36 = vector.shape_cast %35 : vector<2xf32> to vector<2x1xf32>
    %cst_14 = arith.constant 1.562500e-02 : f32
    %37 = vector.broadcast %cst_14 : f32 to vector<2x1xf32>
    %38 = arith.mulf %36, %37 : vector<2x1xf32>
    %cst_15 = arith.constant 0.000000e+00 : f32
    %39 = vector.broadcast %cst_15 : f32 to vector<2x128xf32>
    %40 = arith.select %20, %39, %1 : vector<2x128xi1>, vector<2x128xf32>
    %cst_16 = arith.constant dense<0.000000e+00> : vector<2xf32>
    %41 = vector.multi_reduction <add>, %40, %cst_16 [1] : vector<2x128xf32> to vector<2xf32>
    %42 = vector.shape_cast %41 : vector<2xf32> to vector<2x1xf32>
    %cst_17 = arith.constant 1.562500e-02 : f32
    %43 = vector.broadcast %cst_17 : f32 to vector<2x1xf32>
    %44 = arith.mulf %42, %43 : vector<2x1xf32>
    %45 = vector.shape_cast %26 : vector<2x1xf32> to vector<2x1xf32>
    %46 = vector.broadcast %45 : vector<2x1xf32> to vector<2x128xf32>
    %47 = vector.shape_cast %32 : vector<2x1xf32> to vector<2x1xf32>
    %48 = vector.broadcast %47 : vector<2x1xf32> to vector<2x128xf32>
    %49 = arith.select %20, %46, %48 : vector<2x128xi1>, vector<2x128xf32>
    %50 = arith.subf %0, %49 : vector<2x128xf32>
    %51 = vector.shape_cast %38 : vector<2x1xf32> to vector<2x1xf32>
    %52 = vector.broadcast %51 : vector<2x1xf32> to vector<2x128xf32>
    %53 = vector.shape_cast %44 : vector<2x1xf32> to vector<2x1xf32>
    %54 = vector.broadcast %53 : vector<2x1xf32> to vector<2x128xf32>
    %55 = arith.select %20, %52, %54 : vector<2x128xi1>, vector<2x128xf32>
    %56 = arith.subf %1, %55 : vector<2x128xf32>
    %57 = arith.mulf %50, %50 : vector<2x128xf32>
    %cst_18 = arith.constant dense<0.000000e+00> : vector<2xf32>
    %58 = vector.multi_reduction <add>, %57, %cst_18 [1] : vector<2x128xf32> to vector<2xf32>
    %59 = vector.shape_cast %58 : vector<2xf32> to vector<2x1xf32>
    %60 = arith.mulf %50, %56 : vector<2x128xf32>
    %cst_19 = arith.constant dense<0.000000e+00> : vector<2xf32>
    %61 = vector.multi_reduction <add>, %60, %cst_19 [1] : vector<2x128xf32> to vector<2xf32>
    %62 = vector.shape_cast %61 : vector<2xf32> to vector<2x1xf32>
    %63 = tpu.iota {dimensions = array<i32: 0>} : vector<128x128xi32>
    %64 = tpu.iota {dimensions = array<i32: 1>} : vector<128x128xi32>
    %c2_i32_20 = arith.constant 2 : i32
    %c0_i32_21 = arith.constant 0 : i32
    %65 = arith.cmpi eq, %c2_i32_20, %c0_i32_21 : i32
    %c1_i32_22 = arith.constant 1 : i32
    %66 = arith.select %65, %c1_i32_22, %c2_i32_20 : i32
    %67 = vector.broadcast %66 : i32 to vector<128x128xi32>
    %68 = arith.remsi %63, %67 : vector<128x128xi32>
    %c0_i32_23 = arith.constant 0 : i32
    %69 = vector.broadcast %c0_i32_23 : i32 to vector<128x128xi32>
    %70 = arith.cmpi ne, %68, %69 : vector<128x128xi32>
    %c0_i32_24 = arith.constant 0 : i32
    %71 = vector.broadcast %c0_i32_24 : i32 to vector<128x128xi32>
    %72 = arith.cmpi slt, %68, %71 : vector<128x128xi32>
    %c0_i32_25 = arith.constant 0 : i32
    %73 = arith.cmpi slt, %66, %c0_i32_25 : i32
    %74 = vector.broadcast %73 : i1 to vector<128x128xi1>
    %75 = vector.broadcast %74 : vector<128x128xi1> to vector<128x128xi1>
    %76 = arith.xori %72, %75 : vector<128x128xi1>
    %77 = arith.andi %76, %70 : vector<128x128xi1>
    %78 = vector.broadcast %66 : i32 to vector<128x128xi32>
    %79 = arith.addi %68, %78 : vector<128x128xi32>
    %80 = arith.select %77, %79, %68 : vector<128x128xi1>, vector<128x128xi32>
    %c0_i32_26 = arith.constant 0 : i32
    %81 = vector.broadcast %c0_i32_26 : i32 to vector<128x128xi32>
    %82 = arith.cmpi eq, %80, %81 : vector<128x128xi32>
    %c1_i32_27 = arith.constant 1 : i32
    %83 = vector.broadcast %c1_i32_27 : i32 to vector<128x128xi32>
    %84 = arith.addi %63, %83 : vector<128x128xi32>
    %85 = arith.cmpi eq, %64, %84 : vector<128x128xi32>
    %86 = arith.andi %82, %85 : vector<128x128xi1>
    %cst_28 = arith.constant 1.000000e+00 : f32
    %cst_29 = arith.constant 0.000000e+00 : f32
    %87 = vector.broadcast %cst_28 : f32 to vector<128x128xf32>
    %88 = vector.broadcast %cst_29 : f32 to vector<128x128xf32>
    %89 = arith.select %86, %87, %88 : vector<128x128xi1>, vector<128x128xf32>
    %cst_30 = arith.constant dense<true> : vector<128x128xi1>
    %90 = arith.xori %82, %cst_30 : vector<128x128xi1>
    %c1_i32_31 = arith.constant 1 : i32
    %91 = vector.broadcast %c1_i32_31 : i32 to vector<128x128xi32>
    %92 = arith.subi %63, %91 : vector<128x128xi32>
    %93 = arith.cmpi eq, %64, %92 : vector<128x128xi32>
    %94 = arith.andi %90, %93 : vector<128x128xi1>
    %cst_32 = arith.constant 1.000000e+00 : f32
    %cst_33 = arith.constant 0.000000e+00 : f32
    %95 = vector.broadcast %cst_32 : f32 to vector<128x128xf32>
    %96 = vector.broadcast %cst_33 : f32 to vector<128x128xf32>
    %97 = arith.select %94, %95, %96 : vector<128x128xi1>, vector<128x128xf32>
    %98 = arith.subf %89, %97 : vector<128x128xf32>
    %cst_34 = arith.constant dense<0.000000e+00> : vector<2x128xf32>
    %99 = tpu.matmul %50, %98, %cst_34 {dimension_numbers = #tpu.dot_dimension_numbers<[1], [0], [0], [1], [0, 0, 1, 1], [], []>, precision = #tpu.contract_precision<fp32>} : vector<2x128xf32>, vector<128x128xf32>, vector<2x128xf32> -> vector<2x128xf32>
    %100 = arith.mulf %99, %56 : vector<2x128xf32>
    %cst_35 = arith.constant dense<0.000000e+00> : vector<2xf32>
    %101 = vector.multi_reduction <add>, %100, %cst_35 [1] : vector<2x128xf32> to vector<2xf32>
    %102 = vector.shape_cast %101 : vector<2xf32> to vector<2x1xf32>
    %cst_36 = arith.constant 1.000000e+00 : f32
    %103 = vector.broadcast %cst_36 : f32 to vector<2x1xf32>
    %104 = arith.divf %103, %59 : vector<2x1xf32>
    %105 = arith.mulf %62, %104 : vector<2x1xf32>
    %106 = arith.mulf %102, %104 : vector<2x1xf32>
    %107 = arith.mulf %26, %105 : vector<2x1xf32>
    %108 = arith.mulf %32, %106 : vector<2x1xf32>
    %109 = arith.subf %107, %108 : vector<2x1xf32>
    %110 = arith.subf %38, %109 : vector<2x1xf32>
    %111 = arith.mulf %26, %106 : vector<2x1xf32>
    %112 = arith.mulf %32, %105 : vector<2x1xf32>
    %113 = arith.addf %111, %112 : vector<2x1xf32>
    %114 = arith.subf %44, %113 : vector<2x1xf32>
    %c0_37 = arith.constant 0 : index
    %c0_38 = arith.constant 0 : index
    %115 = vector.load %arg3[%c0_37, %c0_38] : memref<2x6xf32, #tpu.memory_space<vmem>>, vector<2x1xf32>
    tpu.vector_store %arg3[%c0_37, %c0_38], %105 {strides = array<i32>} : memref<2x6xf32, #tpu.memory_space<vmem>>, vector<2x1xf32>,
    %c0_39 = arith.constant 0 : index
    %c1 = arith.constant 1 : index
    %116 = vector.load %arg3[%c0_39, %c1] : memref<2x6xf32, #tpu.memory_space<vmem>>, vector<2x1xf32>
    tpu.vector_store %arg3[%c0_39, %c1], %106 {strides = array<i32>} : memref<2x6xf32, #tpu.memory_space<vmem>>, vector<2x1xf32>,
    %cst_40 = arith.constant 0.000000e+00 : f32
    %117 = vector.broadcast %cst_40 : f32 to vector<2x1xf32>
    %118 = arith.subf %117, %106 : vector<2x1xf32>
    %c0_41 = arith.constant 0 : index
    %c2 = arith.constant 2 : index
    %119 = vector.load %arg3[%c0_41, %c2] : memref<2x6xf32, #tpu.memory_space<vmem>>, vector<2x1xf32>
    tpu.vector_store %arg3[%c0_41, %c2], %118 {strides = array<i32>} : memref<2x6xf32, #tpu.memory_space<vmem>>, vector<2x1xf32>,
    %c0_42 = arith.constant 0 : index
    %c3 = arith.constant 3 : index
    %120 = vector.load %arg3[%c0_42, %c3] : memref<2x6xf32, #tpu.memory_space<vmem>>, vector<2x1xf32>
    tpu.vector_store %arg3[%c0_42, %c3], %105 {strides = array<i32>} : memref<2x6xf32, #tpu.memory_space<vmem>>, vector<2x1xf32>,
    %c0_43 = arith.constant 0 : index
    %c4 = arith.constant 4 : index
    %121 = vector.load %arg3[%c0_43, %c4] : memref<2x6xf32, #tpu.memory_space<vmem>>, vector<2x1xf32>
    tpu.vector_store %arg3[%c0_43, %c4], %110 {strides = array<i32>} : memref<2x6xf32, #tpu.memory_space<vmem>>, vector<2x1xf32>,
    %c0_44 = arith.constant 0 : index
    %c5 = arith.constant 5 : index
    %122 = vector.load %arg3[%c0_44, %c5] : memref<2x6xf32, #tpu.memory_space<vmem>>, vector<2x1xf32>
    tpu.vector_store %arg3[%c0_44, %c5], %114 {strides = array<i32>} : memref<2x6xf32, #tpu.memory_space<vmem>>, vector<2x1xf32>,
    return
  }
  func.func @transform_0(%arg0: i32) -> (i32, i32) {
    %c0_i32 = arith.constant 0 : i32
    %c0_i32_0 = arith.constant 0 : i32
    return %arg0, %c0_i32 : i32, i32
  }
  func.func @transform_1(%arg0: i32) -> (i32, i32) {
    %c0_i32 = arith.constant 0 : i32
    %c0_i32_0 = arith.constant 0 : i32
    return %arg0, %c0_i32 : i32, i32
  }
  func.func @transform_2(%arg0: i32) -> (i32, i32) {
    %c0_i32 = arith.constant 0 : i32
    %c0_i32_0 = arith.constant 0 : i32
    return %arg0, %c0_i32 : i32, i32
  }
}

</mosaic_0001>

<llo_original>
// kernel: transform_params_layer.1
$region0: #{transform_params_layer.1}
  #allocation0 [shape = 'u32[]', space=smem, size = 0x4, offset = 0x4, fixed_abs, tag = 'smem constant byte address 0x4 - core index']
  #allocation1 [shape = 'u32[72,128]{1,0:T(1,128)}', space=vmem, size = 0x9000, scoped, tag = 'internal scratch']
  %s0 = inlined_call_operand.vmem [shape: f32[2,128], index: 0, kind: input, shape index: {}]
  %s1 = inlined_call_operand.vmem [shape: f32[2,128], index: 1, kind: input, shape index: {}]
  %s2 = inlined_call_operand.hbm [shape: f32[2,6], index: 2, kind: output, shape index: {}]
  %s3 = sld [smem:[#allocation0]]
  $region18: #{transform_params_layer.1} parent=0
    _
  %s5 = ssub.s32 1, %s3
  %s6 = scalar_select 0, %s5, %s3
  $region1: #{transform_params_layer.1} parent=0
    #allocation2 [shape = 'u8[1024]{0}', space=vmem, size = 0x400, scoped, tag = 'output window, operand 0, single buffered']
    #allocation3 [shape = 's32[1]{0}', space=sflag, size = 0x4, scoped, tag = 'scoped memory for transform_params_layer.1']
    %7 = vsyncpa [#allocation3], 0
    // Predicated region
    $region2: #{transform_params_layer.1} parent=1 // pred_check
      _
    $region3: #{transform_params_layer.1} parent=1 // pred_check_branch
      %9 = sbr.rel (0) target = $region5
    $region4: #{transform_params_layer.1} parent=1 // pred_region
      _
    $region5: #{transform_params_layer.1} parent=1 // pred_fallthru
      _
    // Predicated region
    $region6: #{transform_params_layer.1} parent=1 // pred_check
      _
    $region7: #{transform_params_layer.1} parent=1 // pred_check_branch
      %11 = sbr.rel (0) target = $region9
    $region8: #{transform_params_layer.1} parent=1 // pred_region
      _
    $region9: #{transform_params_layer.1} parent=1 // pred_fallthru
      _
    %v12 = vld [vmem:[%s0] sm:$0x3]
    %v13 = vld [vmem:[%s1] sm:$0x3]
    %v14 = vlaneseq
    %v15 = vand.u32 %v14, 127
    %vm16 = vcmp.lt.s32.totalorder %v15, 0
    %v17 = vsub.s32 0, %v15
    %v18 = vsel %vm16, %v17, %v15
    %v19 = vshrl.u32 %v18, 1
    %v20 = vand.u32 %v18, 1
    %v21 = vsub.s32 0, %v20
    %v22 = vsel %vm16, %v21, %v20
    %vm23 = vcmp.ne.s32.totalorder %v22, 0
    %vm24 = vcmp.lt.s32.totalorder %v22, 0
    %vm25 = vmand %vm24, %vm23
    %v26 = vadd.s32 %v22, 2
    %v27 = vsel %vm25, %v26, %v22
    %vm28 = vcmp.eq.s32.totalorder %v27, 0
    %v29 = vsel %vm28, %v12, 0.0
    %vm30 = vcmask 1041408
    %v31 = vsel %vm30, %v29, 0.0
    %32 = vadd.xlane.f32.xlu0 %v31
    %v33 = vpop.xlane.xlu0 %32
    %v34 = vmul.f32 %v33, 0.015625
    %v35 = vsel %vm28, 0.0, %v12
    %v36 = vsel %vm30, %v35, 0.0
    %37 = vadd.xlane.f32.xlu0 %v36
    %v38 = vpop.xlane.xlu0 %37
    %v39 = vmul.f32 %v38, 0.015625
    %v40 = vsel %vm28, %v13, 0.0
    %v41 = vsel %vm30, %v40, 0.0
    %42 = vadd.xlane.f32.xlu0 %v41
    %v43 = vpop.xlane.xlu0 %42
    %v44 = vmul.f32 %v43, 0.015625
    %v45 = vsel %vm28, 0.0, %v13
    %v46 = vsel %vm30, %v45, 0.0
    %47 = vadd.xlane.f32.xlu0 %v46
    %v48 = vpop.xlane.xlu0 %47
    %v49 = vmul.f32 %v48, 0.015625
    %v50 = vsel %vm28, %v34, %v39
    %v51 = vsub.f32 %v12, %v50
    %v52 = vsel %vm28, %v44, %v49
    %v53 = vsub.f32 %v13, %v52
    %v54 = vmul.f32 %v51, %v51
    %v55 = vsel %vm30, %v54, 0.0
    %56 = vadd.xlane.f32.xlu0 %v55
    %v57 = vpop.xlane.xlu0 %56
    %v58 = vmul.f32 %v51, %v53
    %v59 = vsel %vm30, %v58, 0.0
    %60 = vadd.xlane.f32.xlu0 %v59
    %v61 = vpop.xlane.xlu0 %60
    %v62 = vlaneseq
    %v63 = vshrl.u32 %v62, 7
    %v64 = vadd.s32 %v63, 8
    %v65 = vadd.s32 %v63, 16
    %v66 = vadd.s32 %v63, 24
    %v67 = vadd.s32 %v63, 32
    %v68 = vadd.s32 %v63, 40
    %v69 = vadd.s32 %v63, 48
    %v70 = vadd.s32 %v63, 56
    %v71 = vadd.s32 %v63, 64
    %v72 = vadd.s32 %v63, 72
    %v73 = vadd.s32 %v63, 80
    %v74 = vadd.s32 %v63, 88
    %v75 = vadd.s32 %v63, 96
    %v76 = vadd.s32 %v63, 104
    %v77 = vadd.s32 %v63, 112
    %v78 = vadd.s32 %v63, 120
    %vm79 = vcmp.lt.s32.totalorder %v63, 0
    %v80 = vsub.s32 0, %v63
    %v81 = vsel %vm79, %v80, %v63
    %v82 = vshrl.u32 %v81, 1
    %v83 = vand.u32 %v81, 1
    %v84 = vsub.s32 0, %v83
    %v85 = vsel %vm79, %v84, %v83
    %vm86 = vcmp.lt.s32.totalorder %v64, 0
    %v87 = vsub.s32 0, %v64
    %v88 = vsel %vm86, %v87, %v64
    %v89 = vshrl.u32 %v88, 1
    %v90 = vand.u32 %v88, 1
    %v91 = vsub.s32 0, %v90
    %v92 = vsel %vm86, %v91, %v90
    %vm93 = vcmp.lt.s32.totalorder %v65, 0
    %v94 = vsub.s32 0, %v65
    %v95 = vsel %vm93, %v94, %v65
    %v96 = vshrl.u32 %v95, 1
    %v97 = vand.u32 %v95, 1
    %v98 = vsub.s32 0, %v97
    %v99 = vsel %vm93, %v98, %v97
    %vm100 = vcmp.lt.s32.totalorder %v66, 0
    %v101 = vsub.s32 0, %v66
    %v102 = vsel %vm100, %v101, %v66
    %v103 = vshrl.u32 %v102, 1
    %v104 = vand.u32 %v102, 1
    %v105 = vsub.s32 0, %v104
    %v106 = vsel %vm100, %v105, %v104
    %vm107 = vcmp.lt.s32.totalorder %v67, 0
    %v108 = vsub.s32 0, %v67
    %v109 = vsel %vm107, %v108, %v67
    %v110 = vshrl.u32 %v109, 1
    %v111 = vand.u32 %v109, 1
    %v112 = vsub.s32 0, %v111
    %v113 = vsel %vm107, %v112, %v111
    %vm114 = vcmp.lt.s32.totalorder %v68, 0
    %v115 = vsub.s32 0, %v68
    %v116 = vsel %vm114, %v115, %v68
    %v117 = vshrl.u32 %v116, 1
    %v118 = vand.u32 %v116, 1
    %v119 = vsub.s32 0, %v118
    %v120 = vsel %vm114, %v119, %v118
    %vm121 = vcmp.lt.s32.totalorder %v69, 0
    %v122 = vsub.s32 0, %v69
    %v123 = vsel %vm121, %v122, %v69
    %v124 = vshrl.u32 %v123, 1
    %v125 = vand.u32 %v123, 1
    %v126 = vsub.s32 0, %v125
    %v127 = vsel %vm121, %v126, %v125
    %vm128 = vcmp.lt.s32.totalorder %v70, 0
    %v129 = vsub.s32 0, %v70
    %v130 = vsel %vm128, %v129, %v70
    %v131 = vshrl.u32 %v130, 1
    %v132 = vand.u32 %v130, 1
    %v133 = vsub.s32 0, %v132
    %v134 = vsel %vm128, %v133, %v132
    %vm135 = vcmp.lt.s32.totalorder %v71, 0
    %v136 = vsub.s32 0, %v71
    %v137 = vsel %vm135, %v136, %v71
    %v138 = vshrl.u32 %v137, 1
    %v139 = vand.u32 %v137, 1
    %v140 = vsub.s32 0, %v139
    %v141 = vsel %vm135, %v140, %v139
    %vm142 = vcmp.lt.s32.totalorder %v72, 0
    %v143 = vsub.s32 0, %v72
    %v144 = vsel %vm142, %v143, %v72
    %v145 = vshrl.u32 %v144, 1
    %v146 = vand.u32 %v144, 1
    %v147 = vsub.s32 0, %v146
    %v148 = vsel %vm142, %v147, %v146
    %vm149 = vcmp.lt.s32.totalorder %v73, 0
    %v150 = vsub.s32 0, %v73
    %v151 = vsel %vm149, %v150, %v73
    %v152 = vshrl.u32 %v151, 1
    %v153 = vand.u32 %v151, 1
    %v154 = vsub.s32 0, %v153
    %v155 = vsel %vm149, %v154, %v153
    %vm156 = vcmp.lt.s32.totalorder %v74, 0
    %v157 = vsub.s32 0, %v74
    %v158 = vsel %vm156, %v157, %v74
    %v159 = vshrl.u32 %v158, 1
    %v160 = vand.u32 %v158, 1
    %v161 = vsub.s32 0, %v160
    %v162 = vsel %vm156, %v161, %v160
    %vm163 = vcmp.lt.s32.totalorder %v75, 0
    %v164 = vsub.s32 0, %v75
    %v165 = vsel %vm163, %v164, %v75
    %v166 = vshrl.u32 %v165, 1
    %v167 = vand.u32 %v165, 1
    %v168 = vsub.s32 0, %v167
    %v169 = vsel %vm163, %v168, %v167
    %vm170 = vcmp.lt.s32.totalorder %v76, 0
    %v171 = vsub.s32 0, %v76
    %v172 = vsel %vm170, %v171, %v76
    %v173 = vshrl.u32 %v172, 1
    %v174 = vand.u32 %v172, 1
    %v175 = vsub.s32 0, %v174
    %v176 = vsel %vm170, %v175, %v174
    %vm177 = vcmp.lt.s32.totalorder %v77, 0
    %v178 = vsub.s32 0, %v77
    %v179 = vsel %vm177, %v178, %v77
    %v180 = vshrl.u32 %v179, 1
    %v181 = vand.u32 %v179, 1
    %v182 = vsub.s32 0, %v181
    %v183 = vsel %vm177, %v182, %v181
    %vm184 = vcmp.lt.s32.totalorder %v78, 0
    %v185 = vsub.s32 0, %v78
    %v186 = vsel %vm184, %v185, %v78
    %v187 = vshrl.u32 %v186, 1
    %v188 = vand.u32 %v186, 1
    %v189 = vsub.s32 0, %v188
    %v190 = vsel %vm184, %v189, %v188
    %vm191 = vcmp.ne.s32.totalorder %v85, 0
    %vm192 = vcmp.ne.s32.totalorder %v92, 0
    %vm193 = vcmp.ne.s32.totalorder %v99, 0
    %vm194 = vcmp.ne.s32.totalorder %v106, 0
    %vm195 = vcmp.ne.s32.totalorder %v113, 0
    %vm196 = vcmp.ne.s32.totalorder %v120, 0
    %vm197 = vcmp.ne.s32.totalorder %v127, 0
    %vm198 = vcmp.ne.s32.totalorder %v134, 0
    %vm199 = vcmp.ne.s32.totalorder %v141, 0
    %vm200 = vcmp.ne.s32.totalorder %v148, 0
    %vm201 = vcmp.ne.s32.totalorder %v155, 0
    %vm202 = vcmp.ne.s32.totalorder %v162, 0
    %vm203 = vcmp.ne.s32.totalorder %v169, 0
    %vm204 = vcmp.ne.s32.totalorder %v176, 0
    %vm205 = vcmp.ne.s32.totalorder %v183, 0
    %vm206 = vcmp.ne.s32.totalorder %v190, 0
    %vm207 = vcmp.lt.s32.totalorder %v85, 0
    %vm208 = vcmp.lt.s32.totalorder %v92, 0
    %vm209 = vcmp.lt.s32.totalorder %v99, 0
    %vm210 = vcmp.lt.s32.totalorder %v106, 0
    %vm211 = vcmp.lt.s32.totalorder %v113, 0
    %vm212 = vcmp.lt.s32.totalorder %v120, 0
    %vm213 = vcmp.lt.s32.totalorder %v127, 0
    %vm214 = vcmp.lt.s32.totalorder %v134, 0
    %vm215 = vcmp.lt.s32.totalorder %v141, 0
    %vm216 = vcmp.lt.s32.totalorder %v148, 0
    %vm217 = vcmp.lt.s32.totalorder %v155, 0
    %vm218 = vcmp.lt.s32.totalorder %v162, 0
    %vm219 = vcmp.lt.s32.totalorder %v169, 0
    %vm220 = vcmp.lt.s32.totalorder %v176, 0
    %vm221 = vcmp.lt.s32.totalorder %v183, 0
    %vm222 = vcmp.lt.s32.totalorder %v190, 0
    %vm223 = vmand %vm207, %vm191
    %vm224 = vmand %vm208, %vm192
    %vm225 = vmand %vm209, %vm193
    %vm226 = vmand %vm210, %vm194
    %vm227 = vmand %vm211, %vm195
    %vm228 = vmand %vm212, %vm196
    %vm229 = vmand %vm213, %vm197
    %vm230 = vmand %vm214, %vm198
    %vm231 = vmand %vm215, %vm199
    %vm232 = vmand %vm216, %vm200
    %vm233 = vmand %vm217, %vm201
    %vm234 = vmand %vm218, %vm202
    %vm235 = vmand %vm219, %vm203
    %vm236 = vmand %vm220, %vm204
    %vm237 = vmand %vm221, %vm205
    %vm238 = vmand %vm222, %vm206
    %v239 = vadd.s32 %v85, 2
    %v240 = vadd.s32 %v92, 2
    %v241 = vadd.s32 %v99, 2
    %v242 = vadd.s32 %v106, 2
    %v243 = vadd.s32 %v113, 2
    %v244 = vadd.s32 %v120, 2
    %v245 = vadd.s32 %v127, 2
    %v246 = vadd.s32 %v134, 2
    %v247 = vadd.s32 %v141, 2
    %v248 = vadd.s32 %v148, 2
    %v249 = vadd.s32 %v155, 2
    %v250 = vadd.s32 %v162, 2
    %v251 = vadd.s32 %v169, 2
    %v252 = vadd.s32 %v176, 2
    %v253 = vadd.s32 %v183, 2
    %v254 = vadd.s32 %v190, 2
    %v255 = vsel %vm223, %v239, %v85
    %v256 = vsel %vm224, %v240, %v92
    %v257 = vsel %vm225, %v241, %v99
    %v258 = vsel %vm226, %v242, %v106
    %v259 = vsel %vm227, %v243, %v113
    %v260 = vsel %vm228, %v244, %v120
    %v261 = vsel %vm229, %v245, %v127
    %v262 = vsel %vm230, %v246, %v134
    %v263 = vsel %vm231, %v247, %v141
    %v264 = vsel %vm232, %v248, %v148
    %v265 = vsel %vm233, %v249, %v155
    %v266 = vsel %vm234, %v250, %v162
    %v267 = vsel %vm235, %v251, %v169
    %v268 = vsel %vm236, %v252, %v176
    %v269 = vsel %vm237, %v253, %v183
    %v270 = vsel %vm238, %v254, %v190
    %vm271 = vcmp.eq.s32.totalorder %v255, 0
    %vm272 = vcmp.eq.s32.totalorder %v256, 0
    %vm273 = vcmp.eq.s32.totalorder %v257, 0
    %vm274 = vcmp.eq.s32.totalorder %v258, 0
    %vm275 = vcmp.eq.s32.totalorder %v259, 0
    %vm276 = vcmp.eq.s32.totalorder %v260, 0
    %vm277 = vcmp.eq.s32.totalorder %v261, 0
    %vm278 = vcmp.eq.s32.totalorder %v262, 0
    %vm279 = vcmp.eq.s32.totalorder %v263, 0
    %vm280 = vcmp.eq.s32.totalorder %v264, 0
    %vm281 = vcmp.eq.s32.totalorder %v265, 0
    %vm282 = vcmp.eq.s32.totalorder %v266, 0
    %vm283 = vcmp.eq.s32.totalorder %v267, 0
    %vm284 = vcmp.eq.s32.totalorder %v268, 0
    %vm285 = vcmp.eq.s32.totalorder %v269, 0
    %vm286 = vcmp.eq.s32.totalorder %v270, 0
    %v287 = vadd.s32 %v63, 1
    %v288 = vadd.s32 %v64, 1
    %v289 = vadd.s32 %v65, 1
    %v290 = vadd.s32 %v66, 1
    %v291 = vadd.s32 %v67, 1
    %v292 = vadd.s32 %v68, 1
    %v293 = vadd.s32 %v69, 1
    %v294 = vadd.s32 %v70, 1
    %v295 = vadd.s32 %v71, 1
    %v296 = vadd.s32 %v72, 1
    %v297 = vadd.s32 %v73, 1
    %v298 = vadd.s32 %v74, 1
    %v299 = vadd.s32 %v75, 1
    %v300 = vadd.s32 %v76, 1
    %v301 = vadd.s32 %v77, 1
    %v302 = vadd.s32 %v78, 1
    %vm303 = vcmp.eq.s32.totalorder %v15, %v287
    %vm304 = vcmp.eq.s32.totalorder %v15, %v288
    %vm305 = vcmp.eq.s32.totalorder %v15, %v289
    %vm306 = vcmp.eq.s32.totalorder %v15, %v290
    %vm307 = vcmp.eq.s32.totalorder %v15, %v291
    %vm308 = vcmp.eq.s32.totalorder %v15, %v292
    %vm309 = vcmp.eq.s32.totalorder %v15, %v293
    %vm310 = vcmp.eq.s32.totalorder %v15, %v294
    %vm311 = vcmp.eq.s32.totalorder %v15, %v295
    %vm312 = vcmp.eq.s32.totalorder %v15, %v296
    %vm313 = vcmp.eq.s32.totalorder %v15, %v297
    %vm314 = vcmp.eq.s32.totalorder %v15, %v298
    %vm315 = vcmp.eq.s32.totalorder %v15, %v299
    %vm316 = vcmp.eq.s32.totalorder %v15, %v300
    %vm317 = vcmp.eq.s32.totalorder %v15, %v301
    %vm318 = vcmp.eq.s32.totalorder %v15, %v302
    %vm319 = vmand %vm271, %vm303
    %vm320 = vmand %vm272, %vm304
    %vm321 = vmand %vm273, %vm305
    %vm322 = vmand %vm274, %vm306
    %vm323 = vmand %vm275, %vm307
    %vm324 = vmand %vm276, %vm308
    %vm325 = vmand %vm277, %vm309
    %vm326 = vmand %vm278, %vm310
    %vm327 = vmand %vm279, %vm311
    %vm328 = vmand %vm280, %vm312
    %vm329 = vmand %vm281, %vm313
    %vm330 = vmand %vm282, %vm314
    %vm331 = vmand %vm283, %vm315
    %vm332 = vmand %vm284, %vm316
    %vm333 = vmand %vm285, %vm317
    %vm334 = vmand %vm286, %vm318
    %v335 = vsel %vm319, 1.0, 0.0
    %v336 = vsel %vm320, 1.0, 0.0
    %v337 = vsel %vm321, 1.0, 0.0
    %v338 = vsel %vm322, 1.0, 0.0
    %v339 = vsel %vm323, 1.0, 0.0
    %v340 = vsel %vm324, 1.0, 0.0
    %v341 = vsel %vm325, 1.0, 0.0
    %v342 = vsel %vm326, 1.0, 0.0
    %v343 = vsel %vm327, 1.0, 0.0
    %v344 = vsel %vm328, 1.0, 0.0
    %v345 = vsel %vm329, 1.0, 0.0
    %v346 = vsel %vm330, 1.0, 0.0
    %v347 = vsel %vm331, 1.0, 0.0
    %v348 = vsel %vm332, 1.0, 0.0
    %v349 = vsel %vm333, 1.0, 0.0
    %v350 = vsel %vm334, 1.0, 0.0
    %vm351 = vmxor %vm271, 1
    %vm352 = vmxor %vm272, 1
    %vm353 = vmxor %vm273, 1
    %vm354 = vmxor %vm274, 1
    %vm355 = vmxor %vm275, 1
    %vm356 = vmxor %vm276, 1
    %vm357 = vmxor %vm277, 1
    %vm358 = vmxor %vm278, 1
    %vm359 = vmxor %vm279, 1
    %vm360 = vmxor %vm280, 1
    %vm361 = vmxor %vm281, 1
    %vm362 = vmxor %vm282, 1
    %vm363 = vmxor %vm283, 1
    %vm364 = vmxor %vm284, 1
    %vm365 = vmxor %vm285, 1
    %vm366 = vmxor %vm286, 1
    %v367 = vsub.s32 %v63, 1
    %v368 = vsub.s32 %v64, 1
    %v369 = vsub.s32 %v65, 1
    %v370 = vsub.s32 %v66, 1
    %v371 = vsub.s32 %v67, 1
    %v372 = vsub.s32 %v68, 1
    %v373 = vsub.s32 %v69, 1
    %v374 = vsub.s32 %v70, 1
    %v375 = vsub.s32 %v71, 1
    %v376 = vsub.s32 %v72, 1
    %v377 = vsub.s32 %v73, 1
    %v378 = vsub.s32 %v74, 1
    %v379 = vsub.s32 %v75, 1
    %v380 = vsub.s32 %v76, 1
    %v381 = vsub.s32 %v77, 1
    %v382 = vsub.s32 %v78, 1
    %vm383 = vcmp.eq.s32.totalorder %v15, %v367
    %vm384 = vcmp.eq.s32.totalorder %v15, %v368
    %vm385 = vcmp.eq.s32.totalorder %v15, %v369
    %vm386 = vcmp.eq.s32.totalorder %v15, %v370
    %vm387 = vcmp.eq.s32.totalorder %v15, %v371
    %vm388 = vcmp.eq.s32.totalorder %v15, %v372
    %vm389 = vcmp.eq.s32.totalorder %v15, %v373
    %vm390 = vcmp.eq.s32.totalorder %v15, %v374
    %vm391 = vcmp.eq.s32.totalorder %v15, %v375
    %vm392 = vcmp.eq.s32.totalorder %v15, %v376
    %vm393 = vcmp.eq.s32.totalorder %v15, %v377
    %vm394 = vcmp.eq.s32.totalorder %v15, %v378
    %vm395 = vcmp.eq.s32.totalorder %v15, %v379
    %vm396 = vcmp.eq.s32.totalorder %v15, %v380
    %vm397 = vcmp.eq.s32.totalorder %v15, %v381
    %vm398 = vcmp.eq.s32.totalorder %v15, %v382
    %vm399 = vmand %vm351, %vm383
    %vm400 = vmand %vm352, %vm384
    %vm401 = vmand %vm353, %vm385
    %vm402 = vmand %vm354, %vm386
    %vm403 = vmand %vm355, %vm387
    %vm404 = vmand %vm356, %vm388
    %vm405 = vmand %vm357, %vm389
    %vm406 = vmand %vm358, %vm390
    %vm407 = vmand %vm359, %vm391
    %vm408 = vmand %vm360, %vm392
    %vm409 = vmand %vm361, %vm393
    %vm410 = vmand %vm362, %vm394
    %vm411 = vmand %vm363, %vm395
    %vm412 = vmand %vm364, %vm396
    %vm413 = vmand %vm365, %vm397
    %vm414 = vmand %vm366, %vm398
    %v415 = vsel %vm399, 1.0, 0.0
    %v416 = vsel %vm400, 1.0, 0.0
    %v417 = vsel %vm401, 1.0, 0.0
    %v418 = vsel %vm402, 1.0, 0.0
    %v419 = vsel %vm403, 1.0, 0.0
    %v420 = vsel %vm404, 1.0, 0.0
    %v421 = vsel %vm405, 1.0, 0.0
    %v422 = vsel %vm406, 1.0, 0.0
    %v423 = vsel %vm407, 1.0, 0.0
    %v424 = vsel %vm408, 1.0, 0.0
    %v425 = vsel %vm409, 1.0, 0.0
    %v426 = vsel %vm410, 1.0, 0.0
    %v427 = vsel %vm411, 1.0, 0.0
    %v428 = vsel %vm412, 1.0, 0.0
    %v429 = vsel %vm413, 1.0, 0.0
    %v430 = vsel %vm414, 1.0, 0.0
    %v431 = vsub.f32 %v335, %v415
    %v432 = vsub.f32 %v336, %v416
    %v433 = vsub.f32 %v337, %v417
    %v434 = vsub.f32 %v338, %v418
    %v435 = vsub.f32 %v339, %v419
    %v436 = vsub.f32 %v340, %v420
    %v437 = vsub.f32 %v341, %v421
    %v438 = vsub.f32 %v342, %v422
    %v439 = vsub.f32 %v343, %v423
    %v440 = vsub.f32 %v344, %v424
    %v441 = vsub.f32 %v345, %v425
    %v442 = vsub.f32 %v346, %v426
    %v443 = vsub.f32 %v347, %v427
    %v444 = vsub.f32 %v348, %v428
    %v445 = vsub.f32 %v349, %v429
    %v446 = vsub.f32 %v350, %v430
    %v447 = vand.u32 %v446, 4294901760
    %448 = vmatpush.msra.mxu0 %v447
    %v449 = vand.u32 %v445, 4294901760
    %450 = vmatpush.msra.mxu0 %v449
    %v451 = vand.u32 %v444, 4294901760
    %452 = vmatpush.msra.mxu0 %v451
    %v453 = vand.u32 %v443, 4294901760
    %454 = vmatpush.msra.mxu0 %v453
    %v455 = vand.u32 %v442, 4294901760
    %456 = vmatpush.msra.mxu0 %v455
    %v457 = vand.u32 %v441, 4294901760
    %458 = vmatpush.msra.mxu0 %v457
    %v459 = vand.u32 %v440, 4294901760
    %460 = vmatpush.msra.mxu0 %v459
    %v461 = vand.u32 %v439, 4294901760
    %462 = vmatpush.msra.mxu0 %v461
    %v463 = vand.u32 %v438, 4294901760
    %464 = vmatpush.msra.mxu0 %v463
    %v465 = vand.u32 %v437, 4294901760
    %466 = vmatpush.msra.mxu0 %v465
    %v467 = vand.u32 %v436, 4294901760
    %468 = vmatpush.msra.mxu0 %v467
    %v469 = vand.u32 %v435, 4294901760
    %470 = vmatpush.msra.mxu0 %v469
    %v471 = vand.u32 %v434, 4294901760
    %472 = vmatpush.msra.mxu0 %v471
    %v473 = vand.u32 %v433, 4294901760
    %474 = vmatpush.msra.mxu0 %v473
    %v475 = vand.u32 %v432, 4294901760
    %476 = vmatpush.msra.mxu0 %v475
    %v477 = vand.u32 %v431, 4294901760
    %478 = vmatpush.msra.mxu0 %v477
    %v479 = vand.u32 %v51, 4294901760
    %v480 = vsub.f32 %v51, %v479
    %v481 = vand.u32 %v480, 4294901760
    %v482 = vsub.f32 %v480, %v481
    %v483 = vand.u32 %v482, 4294901760
    %484 = vmatmul.f32.gmra.mxu0 %v483
    %v485 = vpop.f32.mrf.mxu0
    %v486 = vadd.f32 0.0, %v485
    %487 = vdwg.mxu0
    %v488 = vand.u32 %v446, 4294901760
    %v489 = vsub.f32 %v446, %v488
    %v490 = vand.u32 %v489, 4294901760
    %v491 = vsub.f32 %v489, %v490
    %v492 = vand.u32 %v491, 4294901760
    %493 = vmatpush.msra.mxu0 %v492
    %v494 = vand.u32 %v445, 4294901760
    %v495 = vsub.f32 %v445, %v494
    %v496 = vand.u32 %v495, 4294901760
    %v497 = vsub.f32 %v495, %v496
    %v498 = vand.u32 %v497, 4294901760
    %499 = vmatpush.msra.mxu0 %v498
    %v500 = vand.u32 %v444, 4294901760
    %v501 = vsub.f32 %v444, %v500
    %v502 = vand.u32 %v501, 4294901760
    %v503 = vsub.f32 %v501, %v502
    %v504 = vand.u32 %v503, 4294901760
    %505 = vmatpush.msra.mxu0 %v504
    %v506 = vand.u32 %v443, 4294901760
    %v507 = vsub.f32 %v443, %v506
    %v508 = vand.u32 %v507, 4294901760
    %v509 = vsub.f32 %v507, %v508
    %v510 = vand.u32 %v509, 4294901760
    %511 = vmatpush.msra.mxu0 %v510
    %v512 = vand.u32 %v442, 4294901760
    %v513 = vsub.f32 %v442, %v512
    %v514 = vand.u32 %v513, 4294901760
    %v515 = vsub.f32 %v513, %v514
    %v516 = vand.u32 %v515, 4294901760
    %517 = vmatpush.msra.mxu0 %v516
    %v518 = vand.u32 %v441, 4294901760
    %v519 = vsub.f32 %v441, %v518
    %v520 = vand.u32 %v519, 4294901760
    %v521 = vsub.f32 %v519, %v520
    %v522 = vand.u32 %v521, 4294901760
    %523 = vmatpush.msra.mxu0 %v522
    %v524 = vand.u32 %v440, 4294901760
    %v525 = vsub.f32 %v440, %v524
    %v526 = vand.u32 %v525, 4294901760
    %v527 = vsub.f32 %v525, %v526
    %v528 = vand.u32 %v527, 4294901760
    %529 = vmatpush.msra.mxu0 %v528
    %v530 = vand.u32 %v439, 4294901760
    %v531 = vsub.f32 %v439, %v530
    %v532 = vand.u32 %v531, 4294901760
    %v533 = vsub.f32 %v531, %v532
    %v534 = vand.u32 %v533, 4294901760
    %535 = vmatpush.msra.mxu0 %v534
    %v536 = vand.u32 %v438, 4294901760
    %v537 = vsub.f32 %v438, %v536
    %v538 = vand.u32 %v537, 4294901760
    %v539 = vsub.f32 %v537, %v538
    %v540 = vand.u32 %v539, 4294901760
    %541 = vmatpush.msra.mxu0 %v540
    %v542 = vand.u32 %v437, 4294901760
    %v543 = vsub.f32 %v437, %v542
    %v544 = vand.u32 %v543, 4294901760
    %v545 = vsub.f32 %v543, %v544
    %v546 = vand.u32 %v545, 4294901760
    %547 = vmatpush.msra.mxu0 %v546
    %v548 = vand.u32 %v436, 4294901760
    %v549 = vsub.f32 %v436, %v548
    %v550 = vand.u32 %v549, 4294901760
    %v551 = vsub.f32 %v549, %v550
    %v552 = vand.u32 %v551, 4294901760
    %553 = vmatpush.msra.mxu0 %v552
    %v554 = vand.u32 %v435, 4294901760
    %v555 = vsub.f32 %v435, %v554
    %v556 = vand.u32 %v555, 4294901760
    %v557 = vsub.f32 %v555, %v556
    %v558 = vand.u32 %v557, 4294901760
    %559 = vmatpush.msra.mxu0 %v558
    %v560 = vand.u32 %v434, 4294901760
    %v561 = vsub.f32 %v434, %v560
    %v562 = vand.u32 %v561, 4294901760
    %v563 = vsub.f32 %v561, %v562
    %v564 = vand.u32 %v563, 4294901760
    %565 = vmatpush.msra.mxu0 %v564
    %v566 = vand.u32 %v433, 4294901760
    %v567 = vsub.f32 %v433, %v566
    %v568 = vand.u32 %v567, 4294901760
    %v569 = vsub.f32 %v567, %v568
    %v570 = vand.u32 %v569, 4294901760
    %571 = vmatpush.msra.mxu0 %v570
    %v572 = vand.u32 %v432, 4294901760
    %v573 = vsub.f32 %v432, %v572
    %v574 = vand.u32 %v573, 4294901760
    %v575 = vsub.f32 %v573, %v574
    %v576 = vand.u32 %v575, 4294901760
    %577 = vmatpush.msra.mxu0 %v576
    %v578 = vand.u32 %v431, 4294901760
    %v579 = vsub.f32 %v431, %v578
    %v580 = vand.u32 %v579, 4294901760
    %v581 = vsub.f32 %v579, %v580
    %v582 = vand.u32 %v581, 4294901760
    %583 = vmatpush.msra.mxu0 %v582
    %v584 = vand.u32 %v51, 4294901760
    %585 = vmatmul.f32.gmra.mxu0 %v584
    %v586 = vpop.f32.mrf.mxu0
    %v587 = vadd.f32 %v486, %v586
    %588 = vdwg.mxu0
    %v589 = vand.u32 %v446, 4294901760
    %v590 = vsub.f32 %v446, %v589
    %591 = vmatpush.msra.mxu0 %v590
    %v592 = vand.u32 %v445, 4294901760
    %v593 = vsub.f32 %v445, %v592
    %594 = vmatpush.msra.mxu0 %v593
    %v595 = vand.u32 %v444, 4294901760
    %v596 = vsub.f32 %v444, %v595
    %597 = vmatpush.msra.mxu0 %v596
    %v598 = vand.u32 %v443, 4294901760
    %v599 = vsub.f32 %v443, %v598
    %600 = vmatpush.msra.mxu0 %v599
    %v601 = vand.u32 %v442, 4294901760
    %v602 = vsub.f32 %v442, %v601
    %603 = vmatpush.msra.mxu0 %v602
    %v604 = vand.u32 %v441, 4294901760
    %v605 = vsub.f32 %v441, %v604
    %606 = vmatpush.msra.mxu0 %v605
    %v607 = vand.u32 %v440, 4294901760
    %v608 = vsub.f32 %v440, %v607
    %609 = vmatpush.msra.mxu0 %v608
    %v610 = vand.u32 %v439, 4294901760
    %v611 = vsub.f32 %v439, %v610
    %612 = vmatpush.msra.mxu0 %v611
    %v613 = vand.u32 %v438, 4294901760
    %v614 = vsub.f32 %v438, %v613
    %615 = vmatpush.msra.mxu0 %v614
    %v616 = vand.u32 %v437, 4294901760
    %v617 = vsub.f32 %v437, %v616
    %618 = vmatpush.msra.mxu0 %v617
    %v619 = vand.u32 %v436, 4294901760
    %v620 = vsub.f32 %v436, %v619
    %621 = vmatpush.msra.mxu0 %v620
    %v622 = vand.u32 %v435, 4294901760
    %v623 = vsub.f32 %v435, %v622
    %624 = vmatpush.msra.mxu0 %v623
    %v625 = vand.u32 %v434, 4294901760
    %v626 = vsub.f32 %v434, %v625
    %627 = vmatpush.msra.mxu0 %v626
    %v628 = vand.u32 %v433, 4294901760
    %v629 = vsub.f32 %v433, %v628
    %630 = vmatpush.msra.mxu0 %v629
    %v631 = vand.u32 %v432, 4294901760
    %v632 = vsub.f32 %v432, %v631
    %633 = vmatpush.msra.mxu0 %v632
    %v634 = vand.u32 %v431, 4294901760
    %v635 = vsub.f32 %v431, %v634
    %636 = vmatpush.msra.mxu0 %v635
    %v637 = vand.u32 %v51, 4294901760
    %v638 = vsub.f32 %v51, %v637
    %639 = vmatmul.f32.gmra.mxu0 %v638
    %v640 = vpop.f32.mrf.mxu0
    %v641 = vadd.f32 %v587, %v640
    %642 = vdwg.mxu0
    %v643 = vand.u32 %v446, 4294901760
    %644 = vmatpush.msra.mxu0 %v643
    %v645 = vand.u32 %v445, 4294901760
    %646 = vmatpush.msra.mxu0 %v645
    %v647 = vand.u32 %v444, 4294901760
    %648 = vmatpush.msra.mxu0 %v647
    %v649 = vand.u32 %v443, 4294901760
    %650 = vmatpush.msra.mxu0 %v649
    %v651 = vand.u32 %v442, 4294901760
    %652 = vmatpush.msra.mxu0 %v651
    %v653 = vand.u32 %v441, 4294901760
    %654 = vmatpush.msra.mxu0 %v653
    %v655 = vand.u32 %v440, 4294901760
    %656 = vmatpush.msra.mxu0 %v655
    %v657 = vand.u32 %v439, 4294901760
    %658 = vmatpush.msra.mxu0 %v657
    %v659 = vand.u32 %v438, 4294901760
    %660 = vmatpush.msra.mxu0 %v659
    %v661 = vand.u32 %v437, 4294901760
    %662 = vmatpush.msra.mxu0 %v661
    %v663 = vand.u32 %v436, 4294901760
    %664 = vmatpush.msra.mxu0 %v663
    %v665 = vand.u32 %v435, 4294901760
    %666 = vmatpush.msra.mxu0 %v665
    %v667 = vand.u32 %v434, 4294901760
    %668 = vmatpush.msra.mxu0 %v667
    %v669 = vand.u32 %v433, 4294901760
    %670 = vmatpush.msra.mxu0 %v669
    %v671 = vand.u32 %v432, 4294901760
    %672 = vmatpush.msra.mxu0 %v671
    %v673 = vand.u32 %v431, 4294901760
    %674 = vmatpush.msra.mxu0 %v673
    %v675 = vand.u32 %v51, 4294901760
    %v676 = vsub.f32 %v51, %v675
    %v677 = vand.u32 %v676, 4294901760
    %678 = vmatmul.f32.gmra.mxu0 %v677
    %v679 = vpop.f32.mrf.mxu0
    %v680 = vadd.f32 %v641, %v679
    %681 = vdwg.mxu0
    %v682 = vand.u32 %v446, 4294901760
    %v683 = vsub.f32 %v446, %v682
    %v684 = vand.u32 %v683, 4294901760
    %685 = vmatpush.msra.mxu0 %v684
    %v686 = vand.u32 %v445, 4294901760
    %v687 = vsub.f32 %v445, %v686
    %v688 = vand.u32 %v687, 4294901760
    %689 = vmatpush.msra.mxu0 %v688
    %v690 = vand.u32 %v444, 4294901760
    %v691 = vsub.f32 %v444, %v690
    %v692 = vand.u32 %v691, 4294901760
    %693 = vmatpush.msra.mxu0 %v692
    %v694 = vand.u32 %v443, 4294901760
    %v695 = vsub.f32 %v443, %v694
    %v696 = vand.u32 %v695, 4294901760
    %697 = vmatpush.msra.mxu0 %v696
    %v698 = vand.u32 %v442, 4294901760
    %v699 = vsub.f32 %v442, %v698
    %v700 = vand.u32 %v699, 4294901760
    %701 = vmatpush.msra.mxu0 %v700
    %v702 = vand.u32 %v441, 4294901760
    %v703 = vsub.f32 %v441, %v702
    %v704 = vand.u32 %v703, 4294901760
    %705 = vmatpush.msra.mxu0 %v704
    %v706 = vand.u32 %v440, 4294901760
    %v707 = vsub.f32 %v440, %v706
    %v708 = vand.u32 %v707, 4294901760
    %709 = vmatpush.msra.mxu0 %v708
    %v710 = vand.u32 %v439, 4294901760
    %v711 = vsub.f32 %v439, %v710
    %v712 = vand.u32 %v711, 4294901760
    %713 = vmatpush.msra.mxu0 %v712
    %v714 = vand.u32 %v438, 4294901760
    %v715 = vsub.f32 %v438, %v714
    %v716 = vand.u32 %v715, 4294901760
    %717 = vmatpush.msra.mxu0 %v716
    %v718 = vand.u32 %v437, 4294901760
    %v719 = vsub.f32 %v437, %v718
    %v720 = vand.u32 %v719, 4294901760
    %721 = vmatpush.msra.mxu0 %v720
    %v722 = vand.u32 %v436, 4294901760
    %v723 = vsub.f32 %v436, %v722
    %v724 = vand.u32 %v723, 4294901760
    %725 = vmatpush.msra.mxu0 %v724
    %v726 = vand.u32 %v435, 4294901760
    %v727 = vsub.f32 %v435, %v726
    %v728 = vand.u32 %v727, 4294901760
    %729 = vmatpush.msra.mxu0 %v728
    %v730 = vand.u32 %v434, 4294901760
    %v731 = vsub.f32 %v434, %v730
    %v732 = vand.u32 %v731, 4294901760
    %733 = vmatpush.msra.mxu0 %v732
    %v734 = vand.u32 %v433, 4294901760
    %v735 = vsub.f32 %v433, %v734
    %v736 = vand.u32 %v735, 4294901760
    %737 = vmatpush.msra.mxu0 %v736
    %v738 = vand.u32 %v432, 4294901760
    %v739 = vsub.f32 %v432, %v738
    %v740 = vand.u32 %v739, 4294901760
    %741 = vmatpush.msra.mxu0 %v740
    %v742 = vand.u32 %v431, 4294901760
    %v743 = vsub.f32 %v431, %v742
    %v744 = vand.u32 %v743, 4294901760
    %745 = vmatpush.msra.mxu0 %v744
    %v746 = vand.u32 %v51, 4294901760
    %747 = vmatmul.f32.gmra.mxu0 %v746
    %v748 = vpop.f32.mrf.mxu0
    %v749 = vadd.f32 %v680, %v748
    %750 = vdwg.mxu0
    %v751 = vand.u32 %v446, 4294901760
    %752 = vmatpush.msra.mxu0 %v751
    %v753 = vand.u32 %v445, 4294901760
    %754 = vmatpush.msra.mxu0 %v753
    %v755 = vand.u32 %v444, 4294901760
    %756 = vmatpush.msra.mxu0 %v755
    %v757 = vand.u32 %v443, 4294901760
    %758 = vmatpush.msra.mxu0 %v757
    %v759 = vand.u32 %v442, 4294901760
    %760 = vmatpush.msra.mxu0 %v759
    %v761 = vand.u32 %v441, 4294901760
    %762 = vmatpush.msra.mxu0 %v761
    %v763 = vand.u32 %v440, 4294901760
    %764 = vmatpush.msra.mxu0 %v763
    %v765 = vand.u32 %v439, 4294901760
    %766 = vmatpush.msra.mxu0 %v765
    %v767 = vand.u32 %v438, 4294901760
    %768 = vmatpush.msra.mxu0 %v767
    %v769 = vand.u32 %v437, 4294901760
    %770 = vmatpush.msra.mxu0 %v769
    %v771 = vand.u32 %v436, 4294901760
    %772 = vmatpush.msra.mxu0 %v771
    %v773 = vand.u32 %v435, 4294901760
    %774 = vmatpush.msra.mxu0 %v773
    %v775 = vand.u32 %v434, 4294901760
    %776 = vmatpush.msra.mxu0 %v775
    %v777 = vand.u32 %v433, 4294901760
    %778 = vmatpush.msra.mxu0 %v777
    %v779 = vand.u32 %v432, 4294901760
    %780 = vmatpush.msra.mxu0 %v779
    %v781 = vand.u32 %v431, 4294901760
    %782 = vmatpush.msra.mxu0 %v781
    %v783 = vand.u32 %v51, 4294901760
    %784 = vmatmul.f32.gmra.mxu0 %v783
    %v785 = vpop.f32.mrf.mxu0
    %v786 = vadd.f32 %v749, %v785
    %787 = vdwg.mxu0
    %v788 = vmul.f32 %v786, %v53
    %v789 = vsel %vm30, %v788, 0.0
    %790 = vadd.xlane.f32.xlu0 %v789
    %v791 = vpop.xlane.xlu0 %790
    %v792 = vrcp.pop %v57
    %v793 = vmul.f32 %v57, %v792
    %v794 = vsub.f32 1.0, %v793
    %v795 = vmul.f32 %v792, %v794
    %v796 = vadd.f32 %v792, %v795
    %vm797 = vweird.f32 %v57
    %vm798 = vweird.f32 %v792
    %vm799 = vmor %vm797, %vm798
    %v800 = vsel %vm799, %v792, %v796
    %v801 = vand.u32 2147483647, %v57
    %vm802 = vcmp.eq.f32.partialorder %v801, 8.507059e+37
    %v803 = vand.u32 %v57, 2147483648
    %v804 = vor.u32 1.1754944e-38, %v803
    %v805 = vsel %vm802, %v804, %v800
    %v806 = vmul.f32 1.0, %v805
    %v807 = vmul.f32 %v61, %v806
    %v808 = vmul.f32 %v791, %v806
    %v809 = vmul.f32 %v34, %v807
    %v810 = vmul.f32 %v39, %v808
    %v811 = vsub.f32 %v809, %v810
    %v812 = vsub.f32 %v44, %v811
    %v813 = vmul.f32 %v34, %v808
    %v814 = vmul.f32 %v39, %v807
    %v815 = vadd.f32 %v813, %v814
    %v816 = vsub.f32 %v49, %v815
    %vm817 = vcmask 1024
    %818 = vst.msk [vmem:[#allocation2] sm:$0x3] %vm817, %v807
    %vm819 = vcmask 9224
    %820 = vst.msk [vmem:[#allocation2] sm:$0x3] %vm819, %v808
    %v821 = vsub.f32 0.0, %v808
    %vm822 = vcmask 17424
    %823 = vst.msk [vmem:[#allocation2] sm:$0x3] %vm822, %v821
    %vm824 = vcmask 25624
    %825 = vst.msk [vmem:[#allocation2] sm:$0x3] %vm824, %v807
    %vm826 = vcmask 33824
    %827 = vst.msk [vmem:[#allocation2] sm:$0x3] %vm826, %v812
    %vm828 = vcmask 42024
    %829 = vst.msk [vmem:[#allocation2] sm:$0x3] %vm828, %v816
    // Predicated region
    $region10: #{transform_params_layer.1} parent=1 // pred_check
      _
    $region11: #{transform_params_layer.1} parent=1 // pred_check_branch
      %831 = sbr.rel (0) target = $region13
    $region12: #{transform_params_layer.1} parent=1 // pred_region
      %833 = vsyncadd [#allocation3], 0
      %s835 = sshll.u32 [#allocation2], 4
      %s836 = int_to_ptr.vmem [resolvable:$true] %s835
      %s837 = sshll.u32 %s2, 4
      %s838 = int_to_ptr.hbm [resolvable:$true] %s837
      %840 = dma.vmem_to_hbm [thread:$0]  %s836, 32, %s838, [#allocation3]
    $region13: #{transform_params_layer.1} parent=1 // pred_fallthru
      _
    // Predicated region
    $region14: #{transform_params_layer.1} parent=1 // pred_check
      _
    $region15: #{transform_params_layer.1} parent=1 // pred_check_branch
      %842 = sbr.rel (0) target = $region17
    $region16: #{transform_params_layer.1} parent=1 // pred_region
      %844 = dma.done [#allocation3], 32
    $region17: #{transform_params_layer.1} parent=1 // pred_fallthru
      _
    %845 = vsyncpa [#allocation3], 1

</llo_original>
